<compile_context>
chip_gen: v5e
topology: v5e:2x2
jax: 0.10.0
libtpu: 0.0.40
codegen_flags: <defaults>
</compile_context>

<pallas_src>
import math

import jax
import jax.numpy as jnp
from jax.experimental import pallas as pl
from jax.experimental.pallas import tpu as pltpu


# ---------------------------------------------------------------------------
# Kernels
# ---------------------------------------------------------------------------
def _droppath_kernel(keep_ref, scale_ref, x_ref, o_ref):
    """One grid step = one (TR, LANE) tile of one batch element.

    keep_ref  : SMEM (B,) i32, 1 = row kept, 0 = row dropped.
    scale_ref : SMEM (B,) f32, keep_mask[b] / keep_prob (0.0 or 1/keep_prob).
    x_ref     : VMEM (TR, LANE) input tile (batch dim squeezed away).
    o_ref     : VMEM (TR, LANE) output tile.
    """
    b = pl.program_id(0)
    kept = keep_ref[b] != 0

    @pl.when(kept)
    def _():
        o_ref[...] = x_ref[...] * scale_ref[b].astype(x_ref.dtype)

    @pl.when(jnp.logical_not(kept))
    def _():
        # Dropped row: exact zeros.  x_ref may hold a redirected / stale tile
        # whose DMA was skipped, so never multiply it.
        o_ref[...] = jnp.zeros_like(o_ref)


def _droppath_residual_kernel(keep_ref, scale_ref, x_ref, res_ref, o_ref):
    """Fused `residual + drop_path(x)` -- saves a full extra HBM read+write pass."""
    b = pl.program_id(0)
    kept = keep_ref[b] != 0

    @pl.when(kept)
    def _():
        o_ref[...] = res_ref[...] + x_ref[...] * scale_ref[b].astype(x_ref.dtype)

    @pl.when(jnp.logical_not(kept))
    def _():
        o_ref[...] = res_ref[...]


# ---------------------------------------------------------------------------
# Tiling
# ---------------------------------------------------------------------------
_FALLBACK_VMEM = 64 << 20  # smallest per-core VMEM across v5e / v6e / v7x


def _physical_vmem_bytes():
    try:
        return int(pltpu.get_tpu_info().vmem_capacity_bytes)
    except Exception:
        return _FALLBACK_VMEM


def _choose_tile(rows, lane, dtype, n_streams):
    """Rows-per-block + scoped-VMEM limit, generation- and stream-count aware.

    Budget = n_streams x 2 double buffers x (rows_per_block * lane) elements,
    kept well under physical VMEM with headroom for Pallas internal scratch.
    """
    itemsize = jnp.dtype(dtype).itemsize
    sub = max(8, 32 // itemsize)                 # sublane pack: 8 f32 / 16 bf16 / 32 i8
    phys = _physical_vmem_bytes()
    vmem_limit = min(phys * 5 // 8, 64 << 20)    # ~40 MiB on v7x, 64 MiB on v5e/v6e
    headroom = 4 << 20
    per_buf = max(1 << 20, (vmem_limit - headroom) // (2 * n_streams))
    per_buf = min(per_buf, 8 << 20)              # diminishing returns past ~8 MiB
    row_bytes = max(1, lane * itemsize)
    tr = max(sub, (per_buf // row_bytes) // sub * sub)
    if tr >= rows:
        tr = rows                                # full axis is always layout-legal
    else:
        # Prefer an exact divisor of `rows` near the target (search both
        # directions) so the last tile is never ragged (short DMA + masked vst).
        best = None
        t = max(sub, tr // 2)
        hi = min(rows, 2 * tr)
        while t <= hi:
            if rows % t == 0:
                best = t
            t += sub
        if best is not None:
            tr = best
        # else: ragged last tile; Pallas masks it.
    need = 2 * n_streams * tr * row_bytes + headroom
    vmem_limit = max(vmem_limit, min(need, phys))
    return tr, int(vmem_limit)


# ---------------------------------------------------------------------------
# Wrapper
# ---------------------------------------------------------------------------
def drop_path(x, drop_prob, *, key, training=True, residual=None):
    """JAX/Pallas equivalent of DropPath.forward.

    If `residual` is given, returns residual + drop_path(x) fused in one kernel.
    """
    drop_prob = float(drop_prob)
    if drop_prob <= 0.0 or not training:
        return x if residual is None else x + residual
    if residual is not None:
        assert residual.shape == x.shape and residual.dtype == x.dtype

    orig_shape = x.shape
    B = orig_shape[0]
    keep_prob = 1.0 - drop_prob
    u = jax.random.uniform(key, (B,), dtype=jnp.float32)
    keep = u < keep_prob
    keep_i32 = keep.astype(jnp.int32)
    # Fold 1/keep_prob into the prefetched vector: each entry is 0.0 or 1/keep_prob.
    scale = keep.astype(jnp.float32) * jnp.float32(1.0 / keep_prob)

    if x.ndim == 1:
        # Degenerate (B,) input accepted by PyTorch's drop_path: nothing to tile.
        s = scale.astype(x.dtype)
        return x * s if residual is None else residual + x * s

    # Lane-dense layout: fold everything after batch into (rows, 128) when the
    # per-row element count is a multiple of 128 (dense, unmasked stores);
    # otherwise fall back to (N, D) tiles with full D.
    feat = int(math.prod(orig_shape[1:]))
    if feat % 128 == 0:
        rows, lane = feat // 128, 128
    else:
        lane = orig_shape[-1]
        rows = feat // lane
    x3 = x.reshape(B, rows, lane)
    res3 = None if residual is None else residual.reshape(B, rows, lane)

    n_streams = 2 if residual is None else 3          # double-buffered HBM streams
    tr, vmem_limit = _choose_tile(rows, lane, x3.dtype, n_streams)
    grid = (B, pl.cdiv(rows, tr))

    def dense_map(b, t, keep_ref, scale_ref):
        return (b, t, 0)

    def x_map(b, t, keep_ref, scale_ref):
        # Dropped rows all alias block (0, 0): consecutive grid steps then see
        # the same block index, so Pallas skips their input DMA (~drop_prob of
        # the x read traffic on this purely HBM-bound op).  Worst case (no
        # skip) it is merely a redundant fetch -- never incorrect.
        k = keep_ref[b]
        return (b * k, t * k, 0)

    blk_x = pl.BlockSpec((pl.Squeezed(), tr, lane), x_map)
    blk = pl.BlockSpec((pl.Squeezed(), tr, lane), dense_map)

    itemsize = jnp.dtype(x3.dtype).itemsize
    elems = B * rows * lane
    cost = pl.CostEstimate(
        flops=elems * (1 if residual is None else 2),
        transcendentals=0,
        bytes_accessed=n_streams * elems * itemsize,
    )

    if residual is None:
        kernel, in_specs, args = _droppath_kernel, [blk_x], (keep_i32, scale, x3)
    else:
        kernel, in_specs, args = (_droppath_residual_kernel, [blk_x, blk],
                                  (keep_i32, scale, x3, res3))

    # TODO(synk): on v7x, confirm in a profile that the grid actually splits across
    # both TensorCores; if not, switch the token-tile axis to pltpu.CORE_PARALLEL.
    out = pl.pallas_call(
        kernel,
        out_shape=jax.ShapeDtypeStruct((B, rows, lane), x3.dtype),
        grid_spec=pltpu.PrefetchScalarGridSpec(
            num_scalar_prefetch=2,                    # keep mask + scale -> SMEM
            grid=grid,
            in_specs=in_specs,
            out_specs=blk,
        ),
        compiler_params=pltpu.CompilerParams(
            dimension_semantics=("parallel", "parallel"),
            vmem_limit_bytes=vmem_limit,
        ),
        cost_estimate=cost,
    )(*args)
    return out.reshape(orig_shape)


if __name__ == "__main__":
    root = jax.random.PRNGKey(0)
    kx, kres, kmask = jax.random.split(root, 3)

    B, N, D = 4, 8, 128
    drop_prob = 0.5
    keep_prob = 1.0 - drop_prob

    x = jax.random.normal(kx, (B, N, D), dtype=jnp.float32)
    res = jax.random.normal(kres, (B, N, D), dtype=jnp.float32)

    # Reference mask (same key / same construction as the wrapper).
    u = jax.random.uniform(kmask, (B,), dtype=jnp.float32)
    keep_mask = (u < keep_prob).astype(jnp.float32).reshape(B, 1, 1)
    ref = x / keep_prob * keep_mask

    # 1) Plain DropPath (training mode, kernel runs).
    out = jax.block_until_ready(drop_path(x, drop_prob, key=kmask, training=True))
    assert out.shape == x.shape and out.dtype == x.dtype
    assert jnp.allclose(out, ref, rtol=1e-6, atol=1e-6), "mismatch vs reference"

    # 2) Fused residual add.
    out_fused = jax.block_until_ready(
        drop_path(x, drop_prob, key=kmask, training=True, residual=res))
    assert jnp.allclose(out_fused, res + ref, rtol=1e-6, atol=1e-6), "fused mismatch"

    # 3) bf16 input stays in bf16 in-kernel (no f32 upcast).
    x_bf = x.astype(jnp.bfloat16)
    out_bf = jax.block_until_ready(drop_path(x_bf, drop_prob, key=kmask, training=True))
    assert out_bf.dtype == jnp.bfloat16
    ref_bf = (x_bf.astype(jnp.float32) / keep_prob) * keep_mask
    assert jnp.allclose(out_bf.astype(jnp.float32), ref_bf, rtol=5e-2, atol=5e-2), "bf16 mismatch"

    # 4) Odd feature dim (not a multiple of 128): exercises the full-D fallback layout.
    B2, N2, D2 = 2, 5, 96
    x_odd = jax.random.normal(kx, (B2, N2, D2), dtype=jnp.float32)
    u2 = jax.random.uniform(kmask, (B2,), dtype=jnp.float32)
    ref_odd = x_odd / keep_prob * (u2 < keep_prob).astype(jnp.float32).reshape(B2, 1, 1)
    out_odd = jax.block_until_ready(drop_path(x_odd, drop_prob, key=kmask, training=True))
    assert jnp.allclose(out_odd, ref_odd, rtol=1e-6, atol=1e-6), "odd-D mismatch"

    # 5) Eval / drop_prob<=0: identity, no kernel launch.
    out_eval = jax.block_until_ready(drop_path(x, drop_prob, key=kmask, training=False))
    assert jnp.array_equal(out_eval, x)

    print("KERNEL_OK")
</pallas_src>

<mosaic_0001>
module attributes {stable_mosaic.version = 11 : i64} {
  func.func @_droppath_kernel(%arg0: i32, %arg1: i32, %arg2: memref<4xi32, #tpu.memory_space<smem>>, %arg3: memref<4xf32, #tpu.memory_space<smem>>, %arg4: memref<1x8x128xf32, #tpu.memory_space<vmem>>, %arg5: memref<1x8x128xf32, #tpu.memory_space<vmem>>) attributes {dimension_semantics = [#tpu.dimension_semantics<parallel>, #tpu.dimension_semantics<parallel>], iteration_bounds = array<i64: 4, 1>, scalar_prefetch = 2 : i64, scratch_operands = 0 : i64, tpu.core_type = #tpu.core_type<tc>, window_params = [{transform_indices = @transform_0, window_bounds = array<i64: 1, 8, 128>}, {transform_indices = @transform_1, window_bounds = array<i64: 1, 8, 128>}]} {
    %0 = arith.index_cast %arg0 : i32 to index
    %1 = memref.load %arg2[%0] : memref<4xi32, #tpu.memory_space<smem>>
    %c0_i32 = arith.constant 0 : i32
    %2 = arith.cmpi ne, %1, %c0_i32 : i32
    %3 = arith.extui %2 : i1 to i32
    %c0_i32_0 = arith.constant 0 : i32
    %4 = arith.cmpi ne, %3, %c0_i32_0 : i32
    scf.if %4 {
      %c0 = arith.constant 0 : index
      %c0_2 = arith.constant 0 : index
      %c0_3 = arith.constant 0 : index
      %8 = vector.load %arg4[%c0, %c0_2, %c0_3] : memref<1x8x128xf32, #tpu.memory_space<vmem>>, vector<1x8x128xf32>
      %9 = vector.shape_cast %8 : vector<1x8x128xf32> to vector<8x128xf32>
      %10 = arith.index_cast %arg0 : i32 to index
      %11 = memref.load %arg3[%10] : memref<4xf32, #tpu.memory_space<smem>>
      %12 = vector.broadcast %11 : f32 to vector<8x128xf32>
      %13 = arith.mulf %9, %12 : vector<8x128xf32>
      %c0_4 = arith.constant 0 : index
      %c0_5 = arith.constant 0 : index
      %c0_6 = arith.constant 0 : index
      %14 = vector.load %arg5[%c0_4, %c0_5, %c0_6] : memref<1x8x128xf32, #tpu.memory_space<vmem>>, vector<1x8x128xf32>
      %15 = vector.shape_cast %14 : vector<1x8x128xf32> to vector<8x128xf32>
      %16 = vector.shape_cast %13 : vector<8x128xf32> to vector<1x8x128xf32>
      tpu.vector_store %arg5[%c0_4, %c0_5, %c0_6], %16 {strides = array<i32>} : memref<1x8x128xf32, #tpu.memory_space<vmem>>, vector<1x8x128xf32>,
    } else {
    }
    %true = arith.constant true
    %5 = arith.xori %2, %true : i1
    %6 = arith.extui %5 : i1 to i32
    %c0_i32_1 = arith.constant 0 : i32
    %7 = arith.cmpi ne, %6, %c0_i32_1 : i32
    scf.if %7 {
      %cst = arith.constant 0.000000e+00 : f32
      %8 = vector.broadcast %cst : f32 to vector<8x128xf32>
      %c0 = arith.constant 0 : index
      %c0_2 = arith.constant 0 : index
      %c0_3 = arith.constant 0 : index
      %9 = vector.load %arg5[%c0, %c0_2, %c0_3] : memref<1x8x128xf32, #tpu.memory_space<vmem>>, vector<1x8x128xf32>
      %10 = vector.shape_cast %9 : vector<1x8x128xf32> to vector<8x128xf32>
      %11 = vector.shape_cast %8 : vector<8x128xf32> to vector<1x8x128xf32>
      tpu.vector_store %arg5[%c0, %c0_2, %c0_3], %11 {strides = array<i32>} : memref<1x8x128xf32, #tpu.memory_space<vmem>>, vector<1x8x128xf32>,
    } else {
    }
    return
  }
  func.func @transform_0(%arg0: i32, %arg1: i32, %arg2: memref<4xi32, #tpu.memory_space<smem>>, %arg3: memref<4xf32, #tpu.memory_space<smem>>) -> (i32, i32, i32) {
    %0 = arith.index_cast %arg0 : i32 to index
    %1 = memref.load %arg2[%0] : memref<4xi32, #tpu.memory_space<smem>>
    %2 = arith.muli %arg0, %1 : i32
    %3 = arith.muli %arg1, %1 : i32
    %c0_i32 = arith.constant 0 : i32
    %c0_i32_0 = arith.constant 0 : i32
    return %2, %3, %c0_i32 : i32, i32, i32
  }
  func.func @transform_1(%arg0: i32, %arg1: i32, %arg2: memref<4xi32, #tpu.memory_space<smem>>, %arg3: memref<4xf32, #tpu.memory_space<smem>>) -> (i32, i32, i32) {
    %c0_i32 = arith.constant 0 : i32
    %c0_i32_0 = arith.constant 0 : i32
    return %arg0, %arg1, %c0_i32 : i32, i32, i32
  }
}

</mosaic_0001>

<llo_original>
// kernel: tpu_custom_call.1
$region0: #{tpu_custom_call.1}
  #allocation0 [shape = 'u32[]', space=smem, size = 0x4, offset = 0x4, fixed_abs, tag = 'smem constant byte address 0x4 - core index']
  #allocation1 [shape = 'u32[72,128]{1,0:T(1,128)}', space=vmem, size = 0x9000, scoped, tag = 'internal scratch']
  #allocation2 [shape = 's32[1]{0}', space=sflag, size = 0x4, scoped, tag = 'scoped memory for tpu_custom_call.1']
  #allocation3 [shape = 'u8[512]{0}', space=smem, size = 0x200, scoped, tag = 'prefetched SMEM operand 0']
  #allocation4 [shape = 'u8[512]{0}', space=smem, size = 0x200, scoped, tag = 'prefetched SMEM operand 1']
  %s0 = inlined_call_operand.hbm [shape: s32[4], index: 0, kind: input, shape index: {}]
  %s1 = inlined_call_operand.hbm [shape: f32[4], index: 1, kind: input, shape index: {}]
  %s2 = inlined_call_operand.hbm [shape: f32[4,8,128], index: 2, kind: input, shape index: {}]
  %s3 = inlined_call_operand.hbm [shape: f32[4,8,128], index: 3, kind: output, shape index: {}]
  %s4 = sld [smem:[#allocation0]]
  $region49: #{tpu_custom_call.1} parent=0
    _
  %s6 = ssub.s32 1, %s4
  %s7 = scalar_select 0, %s6, %s4
  %s9 = sshll.u32 %s0, 4
  %s10 = int_to_ptr.hbm [resolvable:$true] %s9
  %12 = dma.hbm_to_smem %s10, 16, [#allocation3], [#allocation2]
  %s14 = sshll.u32 %s1, 4
  %s15 = int_to_ptr.hbm [resolvable:$true] %s14
  %17 = dma.hbm_to_smem %s15, 16, [#allocation4], [#allocation2]
  %19 = dma.done [#allocation2], 32
  %20 = sfence
  $region1: #{tpu_custom_call.1} parent=0
    #allocation5 [shape = 'u8[8192]{0}', space=vmem, size = 0x2000, scoped, tag = 'input window, operand 2']
    #allocation6 [shape = 's32[2]{0}', space=sflag, size = 0x8, scoped, tag = 'scoped memory for tpu_custom_call.1']
    #allocation7 [shape = 's32[2]{0}', space=sflag, size = 0x8, scoped, tag = 'scoped memory for tpu_custom_call.1']
    #allocation8 [shape = 'u8[8192]{0}', space=vmem, size = 0x2000, scoped, tag = 'output window, operand 0']
    %21 = vsyncpa [#allocation6], 0
    %s22 = scalar_lea.sflag [#allocation6], 1
    %23 = vsyncpa %s22, 0
    %24 = vsyncpa [#allocation7], 0
    %s25 = scalar_lea.sflag [#allocation7], 1
    %26 = vsyncpa %s25, 0
    loop: start=0, step=1, limit=6
    $region2: #{tpu_custom_call.1} parent=1 // loop_pre_header
      _
    $region3: #{tpu_custom_call.1} parent=1 // loop_header
      %s28 = sphi 0, %s32
      %p29 = scmp.ge.s32.totalorder %s28, 6
      %s35 = sphi 0, %s47
      %s36 = sphi 0, %s43
      %s37 = sphi 0, %s35
      %s38 = sphi 0, %s36
      %s39 = sphi 0, %s37
      %s40 = sphi 0, %s38
      %s58 = sphi 0, %s60
      %s61 = sphi 0, %s58
      %s62 = sphi 0, %s61
      %s78 = sphi 0, %s62
      %s86 = sphi 0, %s88
      %s89 = sphi 0, %s86
      %s90 = sphi 0, %s89
      %s106 = sphi 0, %s90
    $region4: #{tpu_custom_call.1} parent=1 // loop_header_branch
      %31 = sbr.rel (%p29) target = $region8
    $region5: #{tpu_custom_call.1} parent=1 // loop_body
      %s33 = ssub.s32 %s28, 1
      %s34 = ssub.s32 %s28, 2
      %s41 = sadd.s32 1, %s36
      %p42 = scmp.ge.s32.totalorder %s41, 1
      %s43 = scalar_select %p42, 0, %s41
      %s44 = sadd.s32 1, %s35
      %s45 = scalar_select %p42, %s44, %s35
      %p46 = scmp.ge.s32.totalorder %s45, 4
      %s47 = scalar_select %p46, 0, %s45
      %s48 = sld [smem:[#allocation3 + %s35]]
      %s49 = smul.u32 %s35, %s48
      %s50 = smul.u32 %s36, %s48
      %s51 = sld [smem:[#allocation3 + %s47]]
      %s52 = smul.u32 %s47, %s51
      %s53 = smul.u32 %s43, %s51
      %s54 = ssub.s32 %s49, %s52
      %s55 = ssub.s32 %s50, %s53
      %s56 = sor.u32 %s54, %s55
      %p57 = scmp.eq.s32.totalorder %s56, 0
      %s59 = sadd.s32 %s58, 1
      %s60 = scalar_select %p57, %s58, %s59
      %p63 = pneg %p57
      %p64 = scmp.eq.s32.totalorder %s28, 3
      %p65 = por %p63, %p64
      %p66 = scmp.ne.s32.totalorder %s58, %s61
      %p67 = scmp.eq.s32.totalorder %s28, 0
      %p68 = por %p66, %p67
      %p69 = scmp.ne.s32.totalorder %s58, %s61
      %p70 = scmp.eq.s32.totalorder %s33, 3
      %p71 = por %p69, %p70
      %p72 = scmp.ne.s32.totalorder %s61, %s62
      %p73 = scmp.eq.s32.totalorder %s33, 0
      %p74 = por %p72, %p73
      %p75 = scmp.ne.s32.totalorder %s61, %s62
      %p76 = scmp.eq.s32.totalorder %s34, 3
      %p77 = por %p75, %p76
      %p79 = scmp.ne.s32.totalorder %s62, %s78
      %p80 = scmp.eq.s32.totalorder %s34, 0
      %p81 = por %p79, %p80
      %s82 = ssub.s32 %s35, %s47
      %s83 = ssub.s32 %s36, %s43
      %s84 = sor.u32 %s82, %s83
      %p85 = scmp.eq.s32.totalorder %s84, 0
      %s87 = sadd.s32 %s86, 1
      %s88 = scalar_select %p85, %s86, %s87
      %p91 = pneg %p85
      %p92 = scmp.eq.s32.totalorder %s28, 3
      %p93 = por %p91, %p92
      %p94 = scmp.ne.s32.totalorder %s86, %s89
      %p95 = scmp.eq.s32.totalorder %s28, 0
      %p96 = por %p94, %p95
      %p97 = scmp.ne.s32.totalorder %s86, %s89
      %p98 = scmp.eq.s32.totalorder %s33, 3
      %p99 = por %p97, %p98
      %p100 = scmp.ne.s32.totalorder %s89, %s90
      %p101 = scmp.eq.s32.totalorder %s33, 0
      %p102 = por %p100, %p101
      %p103 = scmp.ne.s32.totalorder %s89, %s90
      %p104 = scmp.eq.s32.totalorder %s34, 3
      %p105 = por %p103, %p104
      %p107 = scmp.ne.s32.totalorder %s90, %s106
      %p108 = scmp.eq.s32.totalorder %s34, 0
      %p109 = por %p107, %p108
      %p110 = scmp.le.s32.totalorder 1, %s28
      %p111 = scmp.lt.s32.totalorder %s28, 5
      %p112 = pnand %p110, %p111
      %p113 = pneg %p112
      // Predicated region
      $region9: #{tpu_custom_call.1} parent=5 // pred_check
        _
      $region10: #{tpu_custom_call.1} parent=5 // pred_check_branch
        %115 = sbr.rel (%p112) target = $region12
      $region11: #{tpu_custom_call.1} parent=5 // pred_region
        %s116 = ssub.s32 %s28, 1
      $region12: #{tpu_custom_call.1} parent=5 // pred_fallthru
        _
      %p117 = scmp.lt.s32.totalorder %s28, 4
      // Predicated region
      $region13: #{tpu_custom_call.1} parent=5 // pred_check
        %p118 = pneg %p117
      $region14: #{tpu_custom_call.1} parent=5 // pred_check_branch
        %120 = sbr.rel (%p118) target = $region16
      $region15: #{tpu_custom_call.1} parent=5 // pred_region
        // Predicated region
        $region17: #{tpu_custom_call.1} parent=15 // pred_check
          %p121 = pneg %p68
        $region18: #{tpu_custom_call.1} parent=15 // pred_check_branch
          %123 = sbr.rel (%p121) target = $region20
        $region19: #{tpu_custom_call.1} parent=15 // pred_region
          %s124 = sand.u32 %s58, 1
          %s125 = scalar_lea.sflag [#allocation6], %s124
          %s126 = sand.u32 %s58, 1
          %s127 = smul.addr %s126, 8
          %s128 = scalar_lea.vmem [#allocation5], %s127
          %s129 = sld [smem:[#allocation3 + %s35]]
          %s130 = smul.u32 %s35, %s129
          %s131 = smul.u32 %s36, %s129
          %133 = vsyncadd %s125, 0
          %s134 = sadd.s32 %s131, %s130
          %s135 = smul.addr %s134, 8
          %s136 = scalar_lea.hbm %s2, %s135
          %s138 = sshll.u32 %s136, 4
          %s139 = int_to_ptr.hbm [resolvable:$true] %s138
          %s140 = sshll.u32 %s128, 4
          %s141 = int_to_ptr.vmem [resolvable:$true] %s140
          %143 = dma.hbm_to_vmem [thread:$0]  %s139, 128, %s141, %s125
        $region20: #{tpu_custom_call.1} parent=15 // pred_fallthru
          _
      $region16: #{tpu_custom_call.1} parent=5 // pred_fallthru
        _
      %p144 = scmp.le.s32.totalorder 1, %s28
      %p145 = scmp.lt.s32.totalorder %s28, 5
      %p146 = pnand %p144, %p145
      %p147 = pneg %p146
      // Predicated region
      $region21: #{tpu_custom_call.1} parent=5 // pred_check
        _
      $region22: #{tpu_custom_call.1} parent=5 // pred_check_branch
        %149 = sbr.rel (%p146) target = $region24
      $region23: #{tpu_custom_call.1} parent=5 // pred_region
        %s150 = ssub.s32 %s28, 1
        %s151 = sand.u32 %s61, 1
        %s152 = scalar_lea.sflag [#allocation6], %s151
        %s153 = sand.u32 %s61, 1
        %s154 = smul.addr %s153, 8
        %s155 = scalar_lea.vmem [#allocation5], %s154
        // Predicated region
        $region25: #{tpu_custom_call.1} parent=23 // pred_check
          %p156 = pneg %p74
        $region26: #{tpu_custom_call.1} parent=23 // pred_check_branch
          %158 = sbr.rel (%p156) target = $region28
        $region27: #{tpu_custom_call.1} parent=23 // pred_region
          %160 = dma.done %s152, 128
        $region28: #{tpu_custom_call.1} parent=23 // pred_fallthru
          _
        %s161 = sand.u32 %s61, 1
        %s162 = scalar_lea.sflag [#allocation6], %s161
        %s163 = sand.u32 %s61, 1
        %s164 = smul.addr %s163, 8
        %s165 = scalar_lea.vmem [#allocation5], %s164
        %p166 = pneg %p74
        %p167 = pneg %p71
        %p168 = pneg %p102
        %p169 = pneg %p99
        %s170 = sand.u32 %s89, 1
        %s171 = scalar_lea.sflag [#allocation7], %s170
        %s172 = sand.u32 %s89, 1
        %s173 = smul.addr %s172, 8
        %s174 = scalar_lea.vmem [#allocation8], %s173
        %s175 = sld [smem:[#allocation3 + %s37]]
        %s176 = smul.u32 %s37, %s175
        %s177 = smul.u32 %s38, %s175
        %s178 = sld [smem:[#allocation3 + %s37]]
        %p179 = scmp.ne.s32.totalorder %s178, 0
        // Predicated region
        $region29: #{tpu_custom_call.1} parent=23 // pred_check
          %p180 = pneg %p179
        $region30: #{tpu_custom_call.1} parent=23 // pred_check_branch
          %182 = sbr.rel (%p180) target = $region32
        $region31: #{tpu_custom_call.1} parent=23 // pred_region
          %v183 = vld [vmem:[%s155] sm:$0xff]
          %s184 = sld [smem:[#allocation4 + %s37]]
          %v185 = vstv %s184
          %v186 = vmul.f32 %v183, %v185
          %187 = vst [vmem:[%s174] sm:$0xff] %v186
        $region32: #{tpu_custom_call.1} parent=23 // pred_fallthru
          _
        %p188 = scmp.eq.s32.totalorder %s178, 0
        // Predicated region
        $region33: #{tpu_custom_call.1} parent=23 // pred_check
          %p189 = pneg %p188
        $region34: #{tpu_custom_call.1} parent=23 // pred_check_branch
          %191 = sbr.rel (%p189) target = $region36
        $region35: #{tpu_custom_call.1} parent=23 // pred_region
          %192 = vst [vmem:[%s174] sm:$0xff] 0.0
        $region36: #{tpu_custom_call.1} parent=23 // pred_fallthru
          _
        %s193 = sand.u32 %s89, 1
        %s194 = scalar_lea.sflag [#allocation7], %s193
        %s195 = sand.u32 %s89, 1
        %s196 = smul.addr %s195, 8
        %s197 = scalar_lea.vmem [#allocation8], %s196
        // Predicated region
        $region37: #{tpu_custom_call.1} parent=23 // pred_check
          %p198 = pneg %p99
        $region38: #{tpu_custom_call.1} parent=23 // pred_check_branch
          %200 = sbr.rel (%p198) target = $region40
        $region39: #{tpu_custom_call.1} parent=23 // pred_region
          %202 = vsyncadd %s194, 0
          %s203 = sadd.s32 %s38, %s37
          %s204 = smul.addr %s203, 8
          %s205 = scalar_lea.hbm %s3, %s204
          %s207 = sshll.u32 %s197, 4
          %s208 = int_to_ptr.vmem [resolvable:$true] %s207
          %s209 = sshll.u32 %s205, 4
          %s210 = int_to_ptr.hbm [resolvable:$true] %s209
          %212 = dma.vmem_to_hbm [thread:$0]  %s208, 128, %s210, %s194
        $region40: #{tpu_custom_call.1} parent=23 // pred_fallthru
          _
      $region24: #{tpu_custom_call.1} parent=5 // pred_fallthru
        _
      %p213 = scmp.le.s32.totalorder 2, %s28
      // Predicated region
      $region41: #{tpu_custom_call.1} parent=5 // pred_check
        %p214 = pneg %p213
      $region42: #{tpu_custom_call.1} parent=5 // pred_check_branch
        %216 = sbr.rel (%p214) target = $region44
      $region43: #{tpu_custom_call.1} parent=5 // pred_region
        %s217 = ssub.s32 %s28, 2
        // Predicated region
        $region45: #{tpu_custom_call.1} parent=43 // pred_check
          %p218 = pneg %p105
        $region46: #{tpu_custom_call.1} parent=43 // pred_check_branch
          %220 = sbr.rel (%p218) target = $region48
        $region47: #{tpu_custom_call.1} parent=43 // pred_region
          %s221 = sand.u32 %s90, 1
          %s222 = scalar_lea.sflag [#allocation7], %s221
          %s223 = sand.u32 %s90, 1
          %s224 = smul.addr %s223, 8
          %s225 = scalar_lea.vmem [#allocation8], %s224
          %227 = dma.done %s222, 128
        $region48: #{tpu_custom_call.1} parent=43 // pred_fallthru
          _
      $region44: #{tpu_custom_call.1} parent=5 // pred_fallthru
        _
    $region6: #{tpu_custom_call.1} parent=1 // loop_footer
      %s32 = sadd.s32 1, %s28
    $region7: #{tpu_custom_call.1} parent=1 // loop_footer_branch
      %27 = sbr.rel target = $region3
    $region8: #{tpu_custom_call.1} parent=1 // loop_exit
      _
    %228 = vsyncpa [#allocation6], 1
    %s229 = scalar_lea.sflag [#allocation6], 1
    %230 = vsyncpa %s229, 1
    %231 = vsyncpa [#allocation7], 1
    %s232 = scalar_lea.sflag [#allocation7], 1
    %233 = vsyncpa %s232, 1

</llo_original>
